<compile_context>
chip_gen: v7x
topology: tpu7x:2x2x1
jax: 0.10.0
libtpu: 0.0.40
codegen_flags: <defaults>
</compile_context>

<pallas_src>
import functools

import jax
import jax.numpy as jnp
from jax import lax
from jax.experimental import pallas as pl
from jax.experimental.pallas import tpu as pltpu

KH = KW = 3
PAD = 5
STRIDE = 1


def _conv_kernel(x_ref, w_ref, b_ref, o_ref, *, wp):
    # x_ref: (KW*Cin, Ntot + E)  kw-interleaved, batch-flattened, lane-major input
    # w_ref: (KH, Cout, KW*Cin)  per-kh weight slabs (Cout rows, K=KW*Cin cols)
    # b_ref: (Cout, 1)
    # o_ref: (Cout, Ntot)        lane-dense output on the padded per-image grid
    cout, ntot = o_ref.shape

    # bias-initialized f32 accumulator (one lane-broadcast, hoisted)
    acc = jnp.broadcast_to(b_ref[...].astype(jnp.float32), (cout, ntot))

    # kh taps = static lane-offset slices of the same buffer; kw+Cin already
    # folded into the contraction dim -> 3 matmuls with K = KW*Cin.
    for kh in range(KH):
        off = kh * wp
        piece = x_ref[:, off:off + ntot]                    # (KW*Cin, Ntot)
        acc = acc + jnp.dot(w_ref[kh], piece,
                            preferred_element_type=jnp.float32)

    o_ref[...] = acc.astype(o_ref.dtype)                    # dense, unmasked store


def upsample_forward(x_nchw, weight_oihw, bias):
    """Conv2d(in_ch, out_ch, 3, stride=1, padding=5) forward, PyTorch semantics.

    x_nchw:      (N, Cin, H, W)
    weight_oihw: (Cout, Cin, 3, 3)
    bias:        (Cout,)
    returns:     (N, Cout, H + 2*PAD - 2, W + 2*PAD - 2)
    """
    N, Cin, H, W = x_nchw.shape
    Cout = weight_oihw.shape[0]
    Ho = H + 2 * PAD - (KH - 1)
    Wo = W + 2 * PAD - (KW - 1)

    R = KH - 1                      # kernel reach (2)
    OFF = PAD - R                   # bias-only border width on each side (3)
    Hi, Wi = H + R, W + R           # interior output size (window touches data)
    Hp, Wp = H + 2 * R, W + 2 * R   # pad-by-2 input for the interior conv
    L = Hp * Wp
    Lb = ((L + 127) // 128) * 128   # per-image lane stride, vreg aligned
    Ntot = N * Lb                   # whole batch in the lane dimension
    E = ((R * Wp + R + 127) // 128) * 128   # slack for in-kernel kh lane shifts

    f32 = jnp.float32

    # ---- glue (plain XLA): channel-first layout prep, no NHWC transposes ----
    xp = jnp.pad(x_nchw.astype(f32), ((0, 0), (0, 0), (R, R), (R, R)))
    xf = jnp.pad(xp.reshape(N, Cin, L), ((0, 0), (0, 0), (0, Lb - L)))  # (N,Cin,Lb)
    flat = jnp.transpose(xf, (1, 0, 2)).reshape(Cin, Ntot)              # (Cin,Ntot)
    flat_e = jnp.pad(flat, ((0, 0), (0, E + KW - 1)))
    # kw-replicated rows: row kw*Cin + c holds the image stream shifted by kw lanes
    x3 = jnp.concatenate([flat_e[:, kw:kw + Ntot + E] for kw in range(KW)],
                         axis=0)                                        # (KW*Cin, Ntot+E)

    wt = jnp.transpose(weight_oihw.astype(f32), (2, 3, 1, 0))           # (KH,KW,Cin,Cout)
    w3 = jnp.transpose(wt.reshape(KH, KW * Cin, Cout), (0, 2, 1))       # (KH,Cout,KW*Cin)
    b2 = bias.astype(f32).reshape(Cout, 1)

    kern = functools.partial(_conv_kernel, wp=Wp)
    out_flat = pl.pallas_call(
        kern,
        out_shape=jax.ShapeDtypeStruct((Cout, Ntot), f32),
        grid_spec=pltpu.PrefetchScalarGridSpec(
            num_scalar_prefetch=0,
            grid=(1,),                        # whole (tiny) batch in one step
            in_specs=[
                pl.BlockSpec((KW * Cin, Ntot + E), lambda i: (0, 0)),
                pl.BlockSpec((KH, Cout, KW * Cin), lambda i: (0, 0, 0)),
                pl.BlockSpec((Cout, 1), lambda i: (0, 0)),
            ],
            out_specs=pl.BlockSpec((Cout, Ntot), lambda i: (0, 0)),
        ),
        compiler_params=pltpu.CompilerParams(
            dimension_semantics=("arbitrary",)),
    )(x3, w3, b2)

    # ---- glue: place the interior on a bias-only canvas, already NCHW ----
    interior = out_flat.reshape(Cout, N, Lb)[:, :, :L].reshape(Cout, N, Hp, Wp)
    interior = jnp.transpose(interior[:, :, :Hi, :Wi], (1, 0, 2, 3))    # (N,Cout,Hi,Wi)
    canvas = jnp.broadcast_to(bias.astype(f32)[None, :, None, None],
                              (N, Cout, Ho, Wo))
    out = canvas.at[:, :, OFF:OFF + Hi, OFF:OFF + Wi].set(interior)
    return out.astype(x_nchw.dtype)


if __name__ == "__main__":
    key = jax.random.PRNGKey(0)
    k_x, k_w, k_b = jax.random.split(key, 3)

    N, Cin, H, W = 2, 4, 16, 16
    Cout = 8

    x = jax.random.normal(k_x, (N, Cin, H, W), dtype=jnp.float32)
    # deterministic synthetic parameters (PyTorch weight layout: OIHW)
    fan_in = Cin * KH * KW
    bound = 1.0 / (fan_in ** 0.5)
    weight = jax.random.uniform(k_w, (Cout, Cin, KH, KW), jnp.float32,
                                minval=-bound, maxval=bound)
    bias = jax.random.uniform(k_b, (Cout,), jnp.float32,
                              minval=-bound, maxval=bound)

    out = upsample_forward(x, weight, bias)
    out = jax.block_until_ready(out)

    # correctness check against XLA's conv (same semantics as nn.Conv2d)
    ref = lax.conv_general_dilated(
        x, weight, window_strides=(STRIDE, STRIDE),
        padding=((PAD, PAD), (PAD, PAD)),
        dimension_numbers=("NCHW", "OIHW", "NCHW")) + bias[None, :, None, None]
    assert out.shape == (N, Cout, H + 2 * PAD - 2, W + 2 * PAD - 2)
    assert jnp.allclose(out, ref, atol=1e-4, rtol=1e-4), \
        float(jnp.max(jnp.abs(out - ref)))

    print("KERNEL_OK")
</pallas_src>

<mosaic_0001>
module attributes {stable_mosaic.version = 11 : i64} {
  func.func @_conv_kernel(%arg0: i32, %arg1: memref<12x1152xf32, #tpu.memory_space<vmem>>, %arg2: memref<3x8x12xf32, #tpu.memory_space<vmem>>, %arg3: memref<8x1xf32, #tpu.memory_space<vmem>>, %arg4: memref<8x1024xf32, #tpu.memory_space<vmem>>) attributes {dimension_semantics = [#tpu.dimension_semantics<arbitrary>], iteration_bounds = array<i64: 1>, scalar_prefetch = 0 : i64, scratch_operands = 0 : i64, tpu.core_type = #tpu.core_type<tc>, window_params = [{pipeline_mode = #tpu.pipeline_mode<synchronous>, transform_indices = @transform_0, window_bounds = array<i64: 12, 1152>}, {pipeline_mode = #tpu.pipeline_mode<synchronous>, transform_indices = @transform_1, window_bounds = array<i64: 3, 8, 12>}, {pipeline_mode = #tpu.pipeline_mode<synchronous>, transform_indices = @transform_2, window_bounds = array<i64: 8, 1>}, {pipeline_mode = #tpu.pipeline_mode<synchronous>, transform_indices = @transform_3, window_bounds = array<i64: 8, 1024>}]} {
    %c0 = arith.constant 0 : index
    %c0_0 = arith.constant 0 : index
    %0 = vector.load %arg3[%c0, %c0_0] : memref<8x1xf32, #tpu.memory_space<vmem>>, vector<8x1xf32>
    %1 = vector.shape_cast %0 : vector<8x1xf32> to vector<8x1xf32>
    %2 = vector.broadcast %1 : vector<8x1xf32> to vector<8x1024xf32>
    %c0_1 = arith.constant 0 : index
    %c0_2 = arith.constant 0 : index
    %3 = vector.load %arg1[%c0_1, %c0_2] : memref<12x1152xf32, #tpu.memory_space<vmem>>, vector<12x1024xf32>
    %c0_3 = arith.constant 0 : index
    %c0_4 = arith.constant 0 : index
    %c0_5 = arith.constant 0 : index
    %4 = vector.load %arg2[%c0_3, %c0_4, %c0_5] : memref<3x8x12xf32, #tpu.memory_space<vmem>>, vector<1x8x12xf32>
    %5 = vector.shape_cast %4 : vector<1x8x12xf32> to vector<8x12xf32>
    %cst = arith.constant dense<0.000000e+00> : vector<8x1024xf32>
    %6 = tpu.matmul %5, %3, %cst {dimension_numbers = #tpu.dot_dimension_numbers<[1], [0], [0], [1], [0, 0, 1, 1], [], []>} : vector<8x12xf32>, vector<12x1024xf32>, vector<8x1024xf32> -> vector<8x1024xf32>
    %7 = arith.addf %2, %6 : vector<8x1024xf32>
    %c0_6 = arith.constant 0 : index
    %c20 = arith.constant 20 : index
    %8 = vector.load %arg1[%c0_6, %c20] : memref<12x1152xf32, #tpu.memory_space<vmem>>, vector<12x1024xf32>
    %c1 = arith.constant 1 : index
    %c0_7 = arith.constant 0 : index
    %c0_8 = arith.constant 0 : index
    %9 = vector.load %arg2[%c1, %c0_7, %c0_8] : memref<3x8x12xf32, #tpu.memory_space<vmem>>, vector<1x8x12xf32>
    %10 = vector.shape_cast %9 : vector<1x8x12xf32> to vector<8x12xf32>
    %cst_9 = arith.constant dense<0.000000e+00> : vector<8x1024xf32>
    %11 = tpu.matmul %10, %8, %cst_9 {dimension_numbers = #tpu.dot_dimension_numbers<[1], [0], [0], [1], [0, 0, 1, 1], [], []>} : vector<8x12xf32>, vector<12x1024xf32>, vector<8x1024xf32> -> vector<8x1024xf32>
    %12 = arith.addf %7, %11 : vector<8x1024xf32>
    %c0_10 = arith.constant 0 : index
    %c40 = arith.constant 40 : index
    %13 = vector.load %arg1[%c0_10, %c40] : memref<12x1152xf32, #tpu.memory_space<vmem>>, vector<12x1024xf32>
    %c2 = arith.constant 2 : index
    %c0_11 = arith.constant 0 : index
    %c0_12 = arith.constant 0 : index
    %14 = vector.load %arg2[%c2, %c0_11, %c0_12] : memref<3x8x12xf32, #tpu.memory_space<vmem>>, vector<1x8x12xf32>
    %15 = vector.shape_cast %14 : vector<1x8x12xf32> to vector<8x12xf32>
    %cst_13 = arith.constant dense<0.000000e+00> : vector<8x1024xf32>
    %16 = tpu.matmul %15, %13, %cst_13 {dimension_numbers = #tpu.dot_dimension_numbers<[1], [0], [0], [1], [0, 0, 1, 1], [], []>} : vector<8x12xf32>, vector<12x1024xf32>, vector<8x1024xf32> -> vector<8x1024xf32>
    %17 = arith.addf %12, %16 : vector<8x1024xf32>
    %c0_14 = arith.constant 0 : index
    %c0_15 = arith.constant 0 : index
    %18 = vector.load %arg4[%c0_14, %c0_15] : memref<8x1024xf32, #tpu.memory_space<vmem>>, vector<8x1024xf32>
    tpu.vector_store %arg4[%c0_14, %c0_15], %17 {strides = array<i32>} : memref<8x1024xf32, #tpu.memory_space<vmem>>, vector<8x1024xf32>,
    return
  }
  func.func @transform_0(%arg0: i32) -> (i32, i32) {
    %c0_i32 = arith.constant 0 : i32
    %c0_i32_0 = arith.constant 0 : i32
    %c0_i32_1 = arith.constant 0 : i32
    return %c0_i32, %c0_i32_0 : i32, i32
  }
  func.func @transform_1(%arg0: i32) -> (i32, i32, i32) {
    %c0_i32 = arith.constant 0 : i32
    %c0_i32_0 = arith.constant 0 : i32
    %c0_i32_1 = arith.constant 0 : i32
    %c0_i32_2 = arith.constant 0 : i32
    return %c0_i32, %c0_i32_0, %c0_i32_1 : i32, i32, i32
  }
  func.func @transform_2(%arg0: i32) -> (i32, i32) {
    %c0_i32 = arith.constant 0 : i32
    %c0_i32_0 = arith.constant 0 : i32
    %c0_i32_1 = arith.constant 0 : i32
    return %c0_i32, %c0_i32_0 : i32, i32
  }
  func.func @transform_3(%arg0: i32) -> (i32, i32) {
    %c0_i32 = arith.constant 0 : i32
    %c0_i32_0 = arith.constant 0 : i32
    %c0_i32_1 = arith.constant 0 : i32
    return %c0_i32, %c0_i32_0 : i32, i32
  }
}

</mosaic_0001>

<llo_original>
// kernel: tpu_custom_call.1
$region0: #{tpu_custom_call.1}
  #allocation0 [shape = 'u32[]', space=smem, size = 0x4, offset = 0x4, fixed_abs, tag = 'smem constant byte address 0x4 - core index']
  #allocation1 [shape = 'u32[144,128]{1,0:T(1,128)}', space=vmem, size = 0x12000, scoped, tag = 'internal scratch']
  %s0 = inlined_call_operand.hbm [shape: f32[12,1152], index: 0, kind: input, shape index: {}]
  %s1 = inlined_call_operand.hbm [shape: f32[3,8,12], index: 1, kind: input, shape index: {}]
  %s2 = inlined_call_operand.vmem [shape: f32[8,1], index: 2, kind: input, shape index: {}]
  %s3 = inlined_call_operand.hbm [shape: f32[8,1024], index: 3, kind: output, shape index: {}]
  %s4 = sld [smem:[#allocation0]]
  $region30: #{tpu_custom_call.1} parent=0
    _
  %s6 = ssub.s32 1, %s4
  %s7 = scalar_select 0, %s6, %s4
  $region1: #{tpu_custom_call.1} parent=0
    #allocation2 [shape = 'u8[73728]{0}', space=vmem, size = 0x12000, scoped, tag = 'input window, operand 0, single buffered']
    #allocation3 [shape = 's32[1]{0}', space=sflag, size = 0x4, scoped, tag = 'scoped memory for tpu_custom_call.1']
    #allocation4 [shape = 's32[1]{0}', space=sflag, size = 0x4, scoped, tag = 'scoped memory for tpu_custom_call.1']
    #allocation5 [shape = 'u8[12288]{0}', space=vmem, size = 0x3000, scoped, tag = 'input window, operand 1, single buffered']
    #allocation6 [shape = 's32[1]{0}', space=sflag, size = 0x4, scoped, tag = 'scoped memory for tpu_custom_call.1']
    #allocation7 [shape = 'u8[32768]{0}', space=vmem, size = 0x8000, scoped, tag = 'output window, operand 0, single buffered']
    %8 = vsyncpa [#allocation3], 0
    %9 = vsyncpa [#allocation6], 0
    %10 = vsyncpa [#allocation4], 0
    // Predicated region
    $region2: #{tpu_custom_call.1} parent=1 // pred_check
      _
    $region3: #{tpu_custom_call.1} parent=1 // pred_check_branch
      %12 = sbr.rel (0) target = $region5
    $region4: #{tpu_custom_call.1} parent=1 // pred_region
      %s14 = ssub.s32 2304, 2304
      %15 = vsyncadd [#allocation3], %s14
      %s16 = sshll.u32 [#allocation2], 4
      %s17 = int_to_ptr.vmem [resolvable:$true] %s16
      %22 = dma.hbm_to_vmem [thread:$0]  %s0, 2304, %s17, [#allocation3], 1152, 1152, 72
    $region5: #{tpu_custom_call.1} parent=1 // pred_fallthru
      _
    // Predicated region
    $region6: #{tpu_custom_call.1} parent=1 // pred_check
      _
    $region7: #{tpu_custom_call.1} parent=1 // pred_check_branch
      %24 = sbr.rel (0) target = $region9
    $region8: #{tpu_custom_call.1} parent=1 // pred_region
      %s26 = ssub.s32 384, 384
      %27 = vsyncadd [#allocation6], %s26
      %s28 = sshll.u32 [#allocation5], 4
      %s29 = int_to_ptr.vmem [resolvable:$true] %s28
      %34 = dma.hbm_to_vmem [thread:$0]  %s1, 384, %s29, [#allocation6], 128, 128, 8
    $region9: #{tpu_custom_call.1} parent=1 // pred_fallthru
      _
    // Predicated region
    $region10: #{tpu_custom_call.1} parent=1 // pred_check
      _
    $region11: #{tpu_custom_call.1} parent=1 // pred_check_branch
      %36 = sbr.rel (0) target = $region13
    $region12: #{tpu_custom_call.1} parent=1 // pred_region
      _
    $region13: #{tpu_custom_call.1} parent=1 // pred_fallthru
      _
    // Predicated region
    $region14: #{tpu_custom_call.1} parent=1 // pred_check
      _
    $region15: #{tpu_custom_call.1} parent=1 // pred_check_branch
      %38 = sbr.rel (0) target = $region17
    $region16: #{tpu_custom_call.1} parent=1 // pred_region
      %39 = dma.done [#allocation3], 2304
    $region17: #{tpu_custom_call.1} parent=1 // pred_fallthru
      _
    // Predicated region
    $region18: #{tpu_custom_call.1} parent=1 // pred_check
      _
    $region19: #{tpu_custom_call.1} parent=1 // pred_check_branch
      %41 = sbr.rel (0) target = $region21
    $region20: #{tpu_custom_call.1} parent=1 // pred_region
      %42 = dma.done [#allocation6], 384
    $region21: #{tpu_custom_call.1} parent=1 // pred_fallthru
      _
    %v43 = vld [vmem:[%s2] sm:$0xff]
    %45 = vset.pattern.permute.xlu0 0
    %46 = vperm.xlu0 %45, %v43
    %v47 = vpop.permute.xlu0 %46
    %v49 = vld [vmem:[#allocation2] sm:$0xff]
    %v50 = vld [vmem:[#allocation2 + $0x8] sm:$0xff]
    %v51 = vld [vmem:[#allocation2 + $0x10] sm:$0xff]
    %v52 = vld [vmem:[#allocation2 + $0x18] sm:$0xff]
    %v53 = vld [vmem:[#allocation2 + $0x20] sm:$0xff]
    %v54 = vld [vmem:[#allocation2 + $0x28] sm:$0xff]
    %v55 = vld [vmem:[#allocation2 + $0x30] sm:$0xff]
    %v56 = vld [vmem:[#allocation2 + $0x38] sm:$0xff]
    %v57 = vld [vmem:[#allocation2 + $0x48] sm:$0xf]
    %v58 = vld [vmem:[#allocation2 + $0x50] sm:$0xf]
    %v59 = vld [vmem:[#allocation2 + $0x58] sm:$0xf]
    %v60 = vld [vmem:[#allocation2 + $0x60] sm:$0xf]
    %v61 = vld [vmem:[#allocation2 + $0x68] sm:$0xf]
    %v62 = vld [vmem:[#allocation2 + $0x70] sm:$0xf]
    %v63 = vld [vmem:[#allocation2 + $0x78] sm:$0xf]
    %v64 = vld [vmem:[#allocation2 + $0x80] sm:$0xf]
    %v65 = vld [vmem:[#allocation5] sm:$0xff]
    %vm66 = vcmask 97280
    %v68 = vsel %vm66, %v65, 0
    %vm70 = vcmask 1043456
    %v72 = vsel %vm70, %v57, 0
    %v75 = vsel %vm70, %v58, 0
    %v78 = vsel %vm70, %v59, 0
    %v81 = vsel %vm70, %v60, 0
    %v84 = vsel %vm70, %v61, 0
    %v87 = vsel %vm70, %v62, 0
    %v90 = vsel %vm70, %v63, 0
    %v93 = vsel %vm70, %v64, 0
    %95 = vmatprep.subr.mxu0 %v50
    %96 = vmatpush1.msra.mxu0 %v49
    %97 = vmatprep.subr.mxu0 %v75
    %98 = vmatpush1.msra.mxu0 %v72
    %99 = vmatprep.subr.mxu0 0.0
    %100 = vmatpush1.msra.mxu0 0.0
    %101 = vmatprep.subr.mxu0 0.0
    %102 = vmatpush1.msra.mxu0 0.0
    %103 = vmatprep.subr.mxu0 0.0
    %104 = vmatpush1.msra.mxu0 0.0
    %105 = vmatprep.subr.mxu0 0.0
    %106 = vmatpush1.msra.mxu0 0.0
    %107 = vmatprep.subr.mxu0 0.0
    %108 = vmatpush1.msra.mxu0 0.0
    %109 = vmatprep.subr.mxu0 0.0
    %110 = vmatpush1.msra.mxu0 0.0
    %111 = vmatprep.subr.mxu0 0.0
    %112 = vmatpush1.msra.mxu0 0.0
    %113 = vmatprep.subr.mxu0 0.0
    %114 = vmatpush1.msra.mxu0 0.0
    %115 = vmatprep.subr.mxu0 0.0
    %116 = vmatpush1.msra.mxu0 0.0
    %117 = vmatprep.subr.mxu0 0.0
    %118 = vmatpush1.msra.mxu0 0.0
    %119 = vmatprep.subr.mxu0 0.0
    %120 = vmatpush1.msra.mxu0 0.0
    %121 = vmatprep.subr.mxu0 0.0
    %122 = vmatpush1.msra.mxu0 0.0
    %123 = vmatprep.subr.mxu0 0.0
    %124 = vmatpush1.msra.mxu0 0.0
    %125 = vmatprep.subr.mxu0 0.0
    %126 = vmatpush1.msra.mxu0 0.0
    %127 = vmatprep.subr.mxu0 0.0
    %128 = vmatpush1.msra.mxu0 0.0
    %129 = vmatprep.subr.mxu0 0.0
    %130 = vmatpush1.msra.mxu0 0.0
    %131 = vmatprep.subr.mxu0 0.0
    %132 = vmatpush1.msra.mxu0 0.0
    %133 = vmatprep.subr.mxu0 0.0
    %134 = vmatpush1.msra.mxu0 0.0
    %135 = vmatprep.subr.mxu0 0.0
    %136 = vmatpush1.msra.mxu0 0.0
    %137 = vmatprep.subr.mxu0 0.0
    %138 = vmatpush1.msra.mxu0 0.0
    %139 = vmatprep.subr.mxu0 0.0
    %140 = vmatpush1.msra.mxu0 0.0
    %141 = vmatprep.subr.mxu0 0.0
    %142 = vmatpush1.msra.mxu0 0.0
    %143 = vmatprep.subr.mxu0 0.0
    %144 = vmatpush1.msra.mxu0 0.0
    %145 = vmatprep.subr.mxu0 0.0
    %146 = vmatpush1.msra.mxu0 0.0
    %147 = vmatprep.subr.mxu0 0.0
    %148 = vmatpush1.msra.mxu0 0.0
    %149 = vmatprep.subr.mxu0 0.0
    %150 = vmatpush1.msra.mxu0 0.0
    %151 = vmatprep.subr.mxu0 0.0
    %152 = vmatpush1.msra.mxu0 0.0
    %153 = vmatprep.subr.mxu0 0.0
    %154 = vmatpush1.msra.mxu0 0.0
    %155 = vmatprep.subr.mxu0 0.0
    %156 = vmatpush1.msra.mxu0 0.0
    %157 = vmatprep.subr.mxu0 0.0
    %158 = vmatpush1.msra.mxu0 0.0
    %159 = vmatprep.mubr.f32.mxu0 0.0
    %160 = vmatmul.mubr.f32.gmra.mrb[0].mxu0 %v68
    %v161 = vpop.f32.mrb[0].mxu0
    %v162 = vadd.f32 0.0, %v161
    %v163 = vpop.f32.mrb[0].mxu0
    %v164 = vadd.f32 0.0, %v163
    %165 = vdwg.mxu0
    %166 = vmatprep.subr.mxu0 %v52
    %167 = vmatpush1.msra.mxu0 %v51
    %168 = vmatprep.subr.mxu0 %v81
    %169 = vmatpush1.msra.mxu0 %v78
    %170 = vmatprep.subr.mxu0 0.0
    %171 = vmatpush1.msra.mxu0 0.0
    %172 = vmatprep.subr.mxu0 0.0
    %173 = vmatpush1.msra.mxu0 0.0
    %174 = vmatprep.subr.mxu0 0.0
    %175 = vmatpush1.msra.mxu0 0.0
    %176 = vmatprep.subr.mxu0 0.0
    %177 = vmatpush1.msra.mxu0 0.0
    %178 = vmatprep.subr.mxu0 0.0
    %179 = vmatpush1.msra.mxu0 0.0
    %180 = vmatprep.subr.mxu0 0.0
    %181 = vmatpush1.msra.mxu0 0.0
    %182 = vmatprep.subr.mxu0 0.0
    %183 = vmatpush1.msra.mxu0 0.0
    %184 = vmatprep.subr.mxu0 0.0
    %185 = vmatpush1.msra.mxu0 0.0
    %186 = vmatprep.subr.mxu0 0.0
    %187 = vmatpush1.msra.mxu0 0.0
    %188 = vmatprep.subr.mxu0 0.0
    %189 = vmatpush1.msra.mxu0 0.0
    %190 = vmatprep.subr.mxu0 0.0
    %191 = vmatpush1.msra.mxu0 0.0
    %192 = vmatprep.subr.mxu0 0.0
    %193 = vmatpush1.msra.mxu0 0.0
    %194 = vmatprep.subr.mxu0 0.0
    %195 = vmatpush1.msra.mxu0 0.0
    %196 = vmatprep.subr.mxu0 0.0
    %197 = vmatpush1.msra.mxu0 0.0
    %198 = vmatprep.subr.mxu0 0.0
    %199 = vmatpush1.msra.mxu0 0.0
    %200 = vmatprep.subr.mxu0 0.0
    %201 = vmatpush1.msra.mxu0 0.0
    %202 = vmatprep.subr.mxu0 0.0
    %203 = vmatpush1.msra.mxu0 0.0
    %204 = vmatprep.subr.mxu0 0.0
    %205 = vmatpush1.msra.mxu0 0.0
    %206 = vmatprep.subr.mxu0 0.0
    %207 = vmatpush1.msra.mxu0 0.0
    %208 = vmatprep.subr.mxu0 0.0
    %209 = vmatpush1.msra.mxu0 0.0
    %210 = vmatprep.subr.mxu0 0.0
    %211 = vmatpush1.msra.mxu0 0.0
    %212 = vmatprep.subr.mxu0 0.0
    %213 = vmatpush1.msra.mxu0 0.0
    %214 = vmatprep.subr.mxu0 0.0
    %215 = vmatpush1.msra.mxu0 0.0
    %216 = vmatprep.subr.mxu0 0.0
    %217 = vmatpush1.msra.mxu0 0.0
    %218 = vmatprep.subr.mxu0 0.0
    %219 = vmatpush1.msra.mxu0 0.0
    %220 = vmatprep.subr.mxu0 0.0
    %221 = vmatpush1.msra.mxu0 0.0
    %222 = vmatprep.subr.mxu0 0.0
    %223 = vmatpush1.msra.mxu0 0.0
    %224 = vmatprep.subr.mxu0 0.0
    %225 = vmatpush1.msra.mxu0 0.0
    %226 = vmatprep.subr.mxu0 0.0
    %227 = vmatpush1.msra.mxu0 0.0
    %228 = vmatprep.subr.mxu0 0.0
    %229 = vmatpush1.msra.mxu0 0.0
    %230 = vmatprep.mubr.f32.mxu0 0.0
    %231 = vmatmul.mubr.f32.gmra.mrb[0].mxu0 %v68
    %v232 = vpop.f32.mrb[0].mxu0
    %v233 = vadd.f32 0.0, %v232
    %v234 = vpop.f32.mrb[0].mxu0
    %v235 = vadd.f32 0.0, %v234
    %236 = vdwg.mxu0
    %237 = vmatprep.subr.mxu0 %v54
    %238 = vmatpush1.msra.mxu0 %v53
    %239 = vmatprep.subr.mxu0 %v87
    %240 = vmatpush1.msra.mxu0 %v84
    %241 = vmatprep.subr.mxu0 0.0
    %242 = vmatpush1.msra.mxu0 0.0
    %243 = vmatprep.subr.mxu0 0.0
    %244 = vmatpush1.msra.mxu0 0.0
    %245 = vmatprep.subr.mxu0 0.0
    %246 = vmatpush1.msra.mxu0 0.0
    %247 = vmatprep.subr.mxu0 0.0
    %248 = vmatpush1.msra.mxu0 0.0
    %249 = vmatprep.subr.mxu0 0.0
    %250 = vmatpush1.msra.mxu0 0.0
    %251 = vmatprep.subr.mxu0 0.0
    %252 = vmatpush1.msra.mxu0 0.0
    %253 = vmatprep.subr.mxu0 0.0
    %254 = vmatpush1.msra.mxu0 0.0
    %255 = vmatprep.subr.mxu0 0.0
    %256 = vmatpush1.msra.mxu0 0.0
    %257 = vmatprep.subr.mxu0 0.0
    %258 = vmatpush1.msra.mxu0 0.0
    %259 = vmatprep.subr.mxu0 0.0
    %260 = vmatpush1.msra.mxu0 0.0
    %261 = vmatprep.subr.mxu0 0.0
    %262 = vmatpush1.msra.mxu0 0.0
    %263 = vmatprep.subr.mxu0 0.0
    %264 = vmatpush1.msra.mxu0 0.0
    %265 = vmatprep.subr.mxu0 0.0
    %266 = vmatpush1.msra.mxu0 0.0
    %267 = vmatprep.subr.mxu0 0.0
    %268 = vmatpush1.msra.mxu0 0.0
    %269 = vmatprep.subr.mxu0 0.0
    %270 = vmatpush1.msra.mxu0 0.0
    %271 = vmatprep.subr.mxu0 0.0
    %272 = vmatpush1.msra.mxu0 0.0
    %273 = vmatprep.subr.mxu0 0.0
    %274 = vmatpush1.msra.mxu0 0.0
    %275 = vmatprep.subr.mxu0 0.0
    %276 = vmatpush1.msra.mxu0 0.0
    %277 = vmatprep.subr.mxu0 0.0
    %278 = vmatpush1.msra.mxu0 0.0
    %279 = vmatprep.subr.mxu0 0.0
    %280 = vmatpush1.msra.mxu0 0.0
    %281 = vmatprep.subr.mxu0 0.0
    %282 = vmatpush1.msra.mxu0 0.0
    %283 = vmatprep.subr.mxu0 0.0
    %284 = vmatpush1.msra.mxu0 0.0
    %285 = vmatprep.subr.mxu0 0.0
    %286 = vmatpush1.msra.mxu0 0.0
    %287 = vmatprep.subr.mxu0 0.0
    %288 = vmatpush1.msra.mxu0 0.0
    %289 = vmatprep.subr.mxu0 0.0
    %290 = vmatpush1.msra.mxu0 0.0
    %291 = vmatprep.subr.mxu0 0.0
    %292 = vmatpush1.msra.mxu0 0.0
    %293 = vmatprep.subr.mxu0 0.0
    %294 = vmatpush1.msra.mxu0 0.0
    %295 = vmatprep.subr.mxu0 0.0
    %296 = vmatpush1.msra.mxu0 0.0
    %297 = vmatprep.subr.mxu0 0.0
    %298 = vmatpush1.msra.mxu0 0.0
    %299 = vmatprep.subr.mxu0 0.0
    %300 = vmatpush1.msra.mxu0 0.0
    %301 = vmatprep.mubr.f32.mxu0 0.0
    %302 = vmatmul.mubr.f32.gmra.mrb[0].mxu0 %v68
    %v303 = vpop.f32.mrb[0].mxu0
    %v304 = vadd.f32 0.0, %v303
    %v305 = vpop.f32.mrb[0].mxu0
    %v306 = vadd.f32 0.0, %v305
    %307 = vdwg.mxu0
    %308 = vmatprep.subr.mxu0 %v56
    %309 = vmatpush1.msra.mxu0 %v55
    %310 = vmatprep.subr.mxu0 %v93
    %311 = vmatpush1.msra.mxu0 %v90
    %312 = vmatprep.subr.mxu0 0.0
    %313 = vmatpush1.msra.mxu0 0.0
    %314 = vmatprep.subr.mxu0 0.0
    %315 = vmatpush1.msra.mxu0 0.0
    %316 = vmatprep.subr.mxu0 0.0
    %317 = vmatpush1.msra.mxu0 0.0
    %318 = vmatprep.subr.mxu0 0.0
    %319 = vmatpush1.msra.mxu0 0.0
    %320 = vmatprep.subr.mxu0 0.0
    %321 = vmatpush1.msra.mxu0 0.0
    %322 = vmatprep.subr.mxu0 0.0
    %323 = vmatpush1.msra.mxu0 0.0
    %324 = vmatprep.subr.mxu0 0.0
    %325 = vmatpush1.msra.mxu0 0.0
    %326 = vmatprep.subr.mxu0 0.0
    %327 = vmatpush1.msra.mxu0 0.0
    %328 = vmatprep.subr.mxu0 0.0
    %329 = vmatpush1.msra.mxu0 0.0
    %330 = vmatprep.subr.mxu0 0.0
    %331 = vmatpush1.msra.mxu0 0.0
    %332 = vmatprep.subr.mxu0 0.0
    %333 = vmatpush1.msra.mxu0 0.0
    %334 = vmatprep.subr.mxu0 0.0
    %335 = vmatpush1.msra.mxu0 0.0
    %336 = vmatprep.subr.mxu0 0.0
    %337 = vmatpush1.msra.mxu0 0.0
    %338 = vmatprep.subr.mxu0 0.0
    %339 = vmatpush1.msra.mxu0 0.0
    %340 = vmatprep.subr.mxu0 0.0
    %341 = vmatpush1.msra.mxu0 0.0
    %342 = vmatprep.subr.mxu0 0.0
    %343 = vmatpush1.msra.mxu0 0.0
    %344 = vmatprep.subr.mxu0 0.0
    %345 = vmatpush1.msra.mxu0 0.0
    %346 = vmatprep.subr.mxu0 0.0
    %347 = vmatpush1.msra.mxu0 0.0
    %348 = vmatprep.subr.mxu0 0.0
    %349 = vmatpush1.msra.mxu0 0.0
    %350 = vmatprep.subr.mxu0 0.0
    %351 = vmatpush1.msra.mxu0 0.0
    %352 = vmatprep.subr.mxu0 0.0
    %353 = vmatpush1.msra.mxu0 0.0
    %354 = vmatprep.subr.mxu0 0.0
    %355 = vmatpush1.msra.mxu0 0.0
    %356 = vmatprep.subr.mxu0 0.0
    %357 = vmatpush1.msra.mxu0 0.0
    %358 = vmatprep.subr.mxu0 0.0
    %359 = vmatpush1.msra.mxu0 0.0
    %360 = vmatprep.subr.mxu0 0.0
    %361 = vmatpush1.msra.mxu0 0.0
    %362 = vmatprep.subr.mxu0 0.0
    %363 = vmatpush1.msra.mxu0 0.0
    %364 = vmatprep.subr.mxu0 0.0
    %365 = vmatpush1.msra.mxu0 0.0
    %366 = vmatprep.subr.mxu0 0.0
    %367 = vmatpush1.msra.mxu0 0.0
    %368 = vmatprep.subr.mxu0 0.0
    %369 = vmatpush1.msra.mxu0 0.0
    %370 = vmatprep.subr.mxu0 0.0
    %371 = vmatpush1.msra.mxu0 0.0
    %372 = vmatprep.mubr.f32.mxu0 0.0
    %373 = vmatmul.mubr.f32.gmra.mrb[0].mxu0 %v68
    %v374 = vpop.f32.mrb[0].mxu0
    %v375 = vadd.f32 0.0, %v374
    %v376 = vpop.f32.mrb[0].mxu0
    %v377 = vadd.f32 0.0, %v376
    %378 = vdwg.mxu0
    %v379 = vadd.f32 %v47, %v162
    %v380 = vadd.f32 %v47, %v164
    %v381 = vadd.f32 %v47, %v233
    %v382 = vadd.f32 %v47, %v235
    %v383 = vadd.f32 %v47, %v304
    %v384 = vadd.f32 %v47, %v306
    %v385 = vadd.f32 %v47, %v375
    %v386 = vadd.f32 %v47, %v377
    %v387 = vld [vmem:[#allocation2] sm:$0xff]
    %v388 = vld [vmem:[#allocation2 + $0x8] sm:$0xff]
    %v389 = vld [vmem:[#allocation2 + $0x10] sm:$0xff]
    %v390 = vld [vmem:[#allocation2 + $0x18] sm:$0xff]
    %v391 = vld [vmem:[#allocation2 + $0x20] sm:$0xff]
    %v392 = vld [vmem:[#allocation2 + $0x28] sm:$0xff]
    %v393 = vld [vmem:[#allocation2 + $0x30] sm:$0xff]
    %v394 = vld [vmem:[#allocation2 + $0x38] sm:$0xff]
    %v395 = vld [vmem:[#allocation2 + $0x40] sm:$0xff]
    %v396 = vld [vmem:[#allocation2 + $0x48] sm:$0xf]
    %v397 = vld [vmem:[#allocation2 + $0x50] sm:$0xf]
    %v398 = vld [vmem:[#allocation2 + $0x58] sm:$0xf]
    %v399 = vld [vmem:[#allocation2 + $0x60] sm:$0xf]
    %v400 = vld [vmem:[#allocation2 + $0x68] sm:$0xf]
    %v401 = vld [vmem:[#allocation2 + $0x70] sm:$0xf]
    %v402 = vld [vmem:[#allocation2 + $0x78] sm:$0xf]
    %v403 = vld [vmem:[#allocation2 + $0x80] sm:$0xf]
    %v404 = vld [vmem:[#allocation2 + $0x88] sm:$0xf]
    %s405 = scalar_lea.vmem [#allocation5], 8
    %v406 = vld [vmem:[%s405] sm:$0xff]
    %425 = vrot.lane.b32.xlu0 %v387, 108
    %v426 = vpop.permute.xlu0 %425
    %427 = vrot.lane.b32.xlu0 %v388, 108
    %v428 = vpop.permute.xlu0 %427
    %429 = vrot.lane.b32.xlu0 %v389, 108
    %v430 = vpop.permute.xlu0 %429
    %431 = vrot.lane.b32.xlu0 %v390, 108
    %v432 = vpop.permute.xlu0 %431
    %433 = vrot.lane.b32.xlu0 %v391, 108
    %v434 = vpop.permute.xlu0 %433
    %435 = vrot.lane.b32.xlu0 %v392, 108
    %v436 = vpop.permute.xlu0 %435
    %437 = vrot.lane.b32.xlu0 %v393, 108
    %v438 = vpop.permute.xlu0 %437
    %439 = vrot.lane.b32.xlu0 %v394, 108
    %v440 = vpop.permute.xlu0 %439
    %441 = vrot.lane.b32.xlu0 %v395, 108
    %v442 = vpop.permute.xlu0 %441
    %443 = vrot.lane.b32.xlu0 %v396, 108
    %v444 = vpop.permute.xlu0 %443
    %445 = vrot.lane.b32.xlu0 %v397, 108
    %v446 = vpop.permute.xlu0 %445
    %447 = vrot.lane.b32.xlu0 %v398, 108
    %v448 = vpop.permute.xlu0 %447
    %449 = vrot.lane.b32.xlu0 %v399, 108
    %v450 = vpop.permute.xlu0 %449
    %451 = vrot.lane.b32.xlu0 %v400, 108
    %v452 = vpop.permute.xlu0 %451
    %453 = vrot.lane.b32.xlu0 %v401, 108
    %v454 = vpop.permute.xlu0 %453
    %455 = vrot.lane.b32.xlu0 %v402, 108
    %v456 = vpop.permute.xlu0 %455
    %457 = vrot.lane.b32.xlu0 %v403, 108
    %v458 = vpop.permute.xlu0 %457
    %459 = vrot.lane.b32.xlu0 %v404, 108
    %v460 = vpop.permute.xlu0 %459
    %vm461 = vcmask 883712
    %v462 = vsel %vm461, %v426, %v428
    %v463 = vsel %vm461, %v428, %v430
    %v464 = vsel %vm461, %v430, %v432
    %v465 = vsel %vm461, %v432, %v434
    %v466 = vsel %vm461, %v434, %v436
    %v467 = vsel %vm461, %v436, %v438
    %v468 = vsel %vm461, %v438, %v440
    %v469 = vsel %vm461, %v440, %v442
    %v470 = vsel %vm461, %v444, %v446
    %v471 = vsel %vm461, %v446, %v448
    %v472 = vsel %vm461, %v448, %v450
    %v473 = vsel %vm461, %v450, %v452
    %v474 = vsel %vm461, %v452, %v454
    %v475 = vsel %vm461, %v454, %v456
    %v476 = vsel %vm461, %v456, %v458
    %v477 = vsel %vm461, %v458, %v460
    %v487 = vsel %vm66, %v406, 0
    %v489 = vsel %vm70, %v470, 0
    %v491 = vsel %vm70, %v471, 0
    %v493 = vsel %vm70, %v472, 0
    %v495 = vsel %vm70, %v473, 0
    %v497 = vsel %vm70, %v474, 0
    %v499 = vsel %vm70, %v475, 0
    %v501 = vsel %vm70, %v476, 0
    %v503 = vsel %vm70, %v477, 0
    %505 = vmatprep.subr.mxu0 %v463
    %506 = vmatpush1.msra.mxu0 %v462
    %507 = vmatprep.subr.mxu0 %v491
    %508 = vmatpush1.msra.mxu0 %v489
    %509 = vmatprep.subr.mxu0 0.0
    %510 = vmatpush1.msra.mxu0 0.0
    %511 = vmatprep.subr.mxu0 0.0
    %512 = vmatpush1.msra.mxu0 0.0
    %513 = vmatprep.subr.mxu0 0.0
    %514 = vmatpush1.msra.mxu0 0.0
    %515 = vmatprep.subr.mxu0 0.0
    %516 = vmatpush1.msra.mxu0 0.0
    %517 = vmatprep.subr.mxu0 0.0
    %518 = vmatpush1.msra.mxu0 0.0
    %519 = vmatprep.subr.mxu0 0.0
    %520 = vmatpush1.msra.mxu0 0.0
    %521 = vmatprep.subr.mxu0 0.0
    %522 = vmatpush1.msra.mxu0 0.0
    %523 = vmatprep.subr.mxu0 0.0
    %524 = vmatpush1.msra.mxu0 0.0
    %525 = vmatprep.subr.mxu0 0.0
    %526 = vmatpush1.msra.mxu0 0.0
    %527 = vmatprep.subr.mxu0 0.0
    %528 = vmatpush1.msra.mxu0 0.0
    %529 = vmatprep.subr.mxu0 0.0
    %530 = vmatpush1.msra.mxu0 0.0
    %531 = vmatprep.subr.mxu0 0.0
    %532 = vmatpush1.msra.mxu0 0.0
    %533 = vmatprep.subr.mxu0 0.0
    %534 = vmatpush1.msra.mxu0 0.0
    %535 = vmatprep.subr.mxu0 0.0
    %536 = vmatpush1.msra.mxu0 0.0
    %537 = vmatprep.subr.mxu0 0.0
    %538 = vmatpush1.msra.mxu0 0.0
    %539 = vmatprep.subr.mxu0 0.0
    %540 = vmatpush1.msra.mxu0 0.0
    %541 = vmatprep.subr.mxu0 0.0
    %542 = vmatpush1.msra.mxu0 0.0
    %543 = vmatprep.subr.mxu0 0.0
    %544 = vmatpush1.msra.mxu0 0.0
    %545 = vmatprep.subr.mxu0 0.0
    %546 = vmatpush1.msra.mxu0 0.0
    %547 = vmatprep.subr.mxu0 0.0
    %548 = vmatpush1.msra.mxu0 0.0
    %549 = vmatprep.subr.mxu0 0.0
    %550 = vmatpush1.msra.mxu0 0.0
    %551 = vmatprep.subr.mxu0 0.0
    %552 = vmatpush1.msra.mxu0 0.0
    %553 = vmatprep.subr.mxu0 0.0
    %554 = vmatpush1.msra.mxu0 0.0
    %555 = vmatprep.subr.mxu0 0.0
    %556 = vmatpush1.msra.mxu0 0.0
    %557 = vmatprep.subr.mxu0 0.0
    %558 = vmatpush1.msra.mxu0 0.0
    %559 = vmatprep.subr.mxu0 0.0
    %560 = vmatpush1.msra.mxu0 0.0
    %561 = vmatprep.subr.mxu0 0.0
    %562 = vmatpush1.msra.mxu0 0.0
    %563 = vmatprep.subr.mxu0 0.0
    %564 = vmatpush1.msra.mxu0 0.0
    %565 = vmatprep.subr.mxu0 0.0
    %566 = vmatpush1.msra.mxu0 0.0
    %567 = vmatprep.subr.mxu0 0.0
    %568 = vmatpush1.msra.mxu0 0.0
    %569 = vmatprep.mubr.f32.mxu0 0.0
    %570 = vmatmul.mubr.f32.gmra.mrb[0].mxu0 %v487
    %v571 = vpop.f32.mrb[0].mxu0
    %v572 = vadd.f32 0.0, %v571
    %v573 = vpop.f32.mrb[0].mxu0
    %v574 = vadd.f32 0.0, %v573
    %575 = vdwg.mxu0
    %576 = vmatprep.subr.mxu0 %v465
    %577 = vmatpush1.msra.mxu0 %v464
    %578 = vmatprep.subr.mxu0 %v495
    %579 = vmatpush1.msra.mxu0 %v493
    %580 = vmatprep.subr.mxu0 0.0
    %581 = vmatpush1.msra.mxu0 0.0
    %582 = vmatprep.subr.mxu0 0.0
    %583 = vmatpush1.msra.mxu0 0.0
    %584 = vmatprep.subr.mxu0 0.0
    %585 = vmatpush1.msra.mxu0 0.0
    %586 = vmatprep.subr.mxu0 0.0
    %587 = vmatpush1.msra.mxu0 0.0
    %588 = vmatprep.subr.mxu0 0.0
    %589 = vmatpush1.msra.mxu0 0.0
    %590 = vmatprep.subr.mxu0 0.0
    %591 = vmatpush1.msra.mxu0 0.0
    %592 = vmatprep.subr.mxu0 0.0
    %593 = vmatpush1.msra.mxu0 0.0
    %594 = vmatprep.subr.mxu0 0.0
    %595 = vmatpush1.msra.mxu0 0.0
    %596 = vmatprep.subr.mxu0 0.0
    %597 = vmatpush1.msra.mxu0 0.0
    %598 = vmatprep.subr.mxu0 0.0
    %599 = vmatpush1.msra.mxu0 0.0
    %600 = vmatprep.subr.mxu0 0.0
    %601 = vmatpush1.msra.mxu0 0.0
    %602 = vmatprep.subr.mxu0 0.0
    %603 = vmatpush1.msra.mxu0 0.0
    %604 = vmatprep.subr.mxu0 0.0
    %605 = vmatpush1.msra.mxu0 0.0
    %606 = vmatprep.subr.mxu0 0.0
    %607 = vmatpush1.msra.mxu0 0.0
    %608 = vmatprep.subr.mxu0 0.0
    %609 = vmatpush1.msra.mxu0 0.0
    %610 = vmatprep.subr.mxu0 0.0
    %611 = vmatpush1.msra.mxu0 0.0
    %612 = vmatprep.subr.mxu0 0.0
    %613 = vmatpush1.msra.mxu0 0.0
    %614 = vmatprep.subr.mxu0 0.0
    %615 = vmatpush1.msra.mxu0 0.0
    %616 = vmatprep.subr.mxu0 0.0
    %617 = vmatpush1.msra.mxu0 0.0
    %618 = vmatprep.subr.mxu0 0.0
    %619 = vmatpush1.msra.mxu0 0.0
    %620 = vmatprep.subr.mxu0 0.0
    %621 = vmatpush1.msra.mxu0 0.0
    %622 = vmatprep.subr.mxu0 0.0
    %623 = vmatpush1.msra.mxu0 0.0
    %624 = vmatprep.subr.mxu0 0.0
    %625 = vmatpush1.msra.mxu0 0.0
    %626 = vmatprep.subr.mxu0 0.0
    %627 = vmatpush1.msra.mxu0 0.0
    %628 = vmatprep.subr.mxu0 0.0
    %629 = vmatpush1.msra.mxu0 0.0
    %630 = vmatprep.subr.mxu0 0.0
    %631 = vmatpush1.msra.mxu0 0.0
    %632 = vmatprep.subr.mxu0 0.0
    %633 = vmatpush1.msra.mxu0 0.0
    %634 = vmatprep.subr.mxu0 0.0
    %635 = vmatpush1.msra.mxu0 0.0
    %636 = vmatprep.subr.mxu0 0.0
    %637 = vmatpush1.msra.mxu0 0.0
    %638 = vmatprep.subr.mxu0 0.0
    %639 = vmatpush1.msra.mxu0 0.0
    %640 = vmatprep.mubr.f32.mxu0 0.0
    %641 = vmatmul.mubr.f32.gmra.mrb[0].mxu0 %v487
    %v642 = vpop.f32.mrb[0].mxu0
    %v643 = vadd.f32 0.0, %v642
    %v644 = vpop.f32.mrb[0].mxu0
    %v645 = vadd.f32 0.0, %v644
    %646 = vdwg.mxu0
    %647 = vmatprep.subr.mxu0 %v467
    %648 = vmatpush1.msra.mxu0 %v466
    %649 = vmatprep.subr.mxu0 %v499
    %650 = vmatpush1.msra.mxu0 %v497
    %651 = vmatprep.subr.mxu0 0.0
    %652 = vmatpush1.msra.mxu0 0.0
    %653 = vmatprep.subr.mxu0 0.0
    %654 = vmatpush1.msra.mxu0 0.0
    %655 = vmatprep.subr.mxu0 0.0
    %656 = vmatpush1.msra.mxu0 0.0
    %657 = vmatprep.subr.mxu0 0.0
    %658 = vmatpush1.msra.mxu0 0.0
    %659 = vmatprep.subr.mxu0 0.0
    %660 = vmatpush1.msra.mxu0 0.0
    %661 = vmatprep.subr.mxu0 0.0
    %662 = vmatpush1.msra.mxu0 0.0
    %663 = vmatprep.subr.mxu0 0.0
    %664 = vmatpush1.msra.mxu0 0.0
    %665 = vmatprep.subr.mxu0 0.0
    %666 = vmatpush1.msra.mxu0 0.0
    %667 = vmatprep.subr.mxu0 0.0
    %668 = vmatpush1.msra.mxu0 0.0
    %669 = vmatprep.subr.mxu0 0.0
    %670 = vmatpush1.msra.mxu0 0.0
    %671 = vmatprep.subr.mxu0 0.0
    %672 = vmatpush1.msra.mxu0 0.0
    %673 = vmatprep.subr.mxu0 0.0
    %674 = vmatpush1.msra.mxu0 0.0
    %675 = vmatprep.subr.mxu0 0.0
    %676 = vmatpush1.msra.mxu0 0.0
    %677 = vmatprep.subr.mxu0 0.0
    %678 = vmatpush1.msra.mxu0 0.0
    %679 = vmatprep.subr.mxu0 0.0
    %680 = vmatpush1.msra.mxu0 0.0
    %681 = vmatprep.subr.mxu0 0.0
    %682 = vmatpush1.msra.mxu0 0.0
    %683 = vmatprep.subr.mxu0 0.0
    %684 = vmatpush1.msra.mxu0 0.0
    %685 = vmatprep.subr.mxu0 0.0
    %686 = vmatpush1.msra.mxu0 0.0
    %687 = vmatprep.subr.mxu0 0.0
    %688 = vmatpush1.msra.mxu0 0.0
    %689 = vmatprep.subr.mxu0 0.0
    %690 = vmatpush1.msra.mxu0 0.0
    %691 = vmatprep.subr.mxu0 0.0
    %692 = vmatpush1.msra.mxu0 0.0
    %693 = vmatprep.subr.mxu0 0.0
    %694 = vmatpush1.msra.mxu0 0.0
    %695 = vmatprep.subr.mxu0 0.0
    %696 = vmatpush1.msra.mxu0 0.0
    %697 = vmatprep.subr.mxu0 0.0
    %698 = vmatpush1.msra.mxu0 0.0
    %699 = vmatprep.subr.mxu0 0.0
    %700 = vmatpush1.msra.mxu0 0.0
    %701 = vmatprep.subr.mxu0 0.0
    %702 = vmatpush1.msra.mxu0 0.0
    %703 = vmatprep.subr.mxu0 0.0
    %704 = vmatpush1.msra.mxu0 0.0
    %705 = vmatprep.subr.mxu0 0.0
    %706 = vmatpush1.msra.mxu0 0.0
    %707 = vmatprep.subr.mxu0 0.0
    %708 = vmatpush1.msra.mxu0 0.0
    %709 = vmatprep.subr.mxu0 0.0
    %710 = vmatpush1.msra.mxu0 0.0
    %711 = vmatprep.mubr.f32.mxu0 0.0
    %712 = vmatmul.mubr.f32.gmra.mrb[0].mxu0 %v487
    %v713 = vpop.f32.mrb[0].mxu0
    %v714 = vadd.f32 0.0, %v713
    %v715 = vpop.f32.mrb[0].mxu0
    %v716 = vadd.f32 0.0, %v715
    %717 = vdwg.mxu0
    %718 = vmatprep.subr.mxu0 %v469
    %719 = vmatpush1.msra.mxu0 %v468
    %720 = vmatprep.subr.mxu0 %v503
    %721 = vmatpush1.msra.mxu0 %v501
    %722 = vmatprep.subr.mxu0 0.0
    %723 = vmatpush1.msra.mxu0 0.0
    %724 = vmatprep.subr.mxu0 0.0
    %725 = vmatpush1.msra.mxu0 0.0
    %726 = vmatprep.subr.mxu0 0.0
    %727 = vmatpush1.msra.mxu0 0.0
    %728 = vmatprep.subr.mxu0 0.0
    %729 = vmatpush1.msra.mxu0 0.0
    %730 = vmatprep.subr.mxu0 0.0
    %731 = vmatpush1.msra.mxu0 0.0
    %732 = vmatprep.subr.mxu0 0.0
    %733 = vmatpush1.msra.mxu0 0.0
    %734 = vmatprep.subr.mxu0 0.0
    %735 = vmatpush1.msra.mxu0 0.0
    %736 = vmatprep.subr.mxu0 0.0
    %737 = vmatpush1.msra.mxu0 0.0
    %738 = vmatprep.subr.mxu0 0.0
    %739 = vmatpush1.msra.mxu0 0.0
    %740 = vmatprep.subr.mxu0 0.0
    %741 = vmatpush1.msra.mxu0 0.0
    %742 = vmatprep.subr.mxu0 0.0
    %743 = vmatpush1.msra.mxu0 0.0
    %744 = vmatprep.subr.mxu0 0.0
    %745 = vmatpush1.msra.mxu0 0.0
    %746 = vmatprep.subr.mxu0 0.0
    %747 = vmatpush1.msra.mxu0 0.0
    %748 = vmatprep.subr.mxu0 0.0
    %749 = vmatpush1.msra.mxu0 0.0
    %750 = vmatprep.subr.mxu0 0.0
    %751 = vmatpush1.msra.mxu0 0.0
    %752 = vmatprep.subr.mxu0 0.0
    %753 = vmatpush1.msra.mxu0 0.0
    %754 = vmatprep.subr.mxu0 0.0
    %755 = vmatpush1.msra.mxu0 0.0
    %756 = vmatprep.subr.mxu0 0.0
    %757 = vmatpush1.msra.mxu0 0.0
    %758 = vmatprep.subr.mxu0 0.0
    %759 = vmatpush1.msra.mxu0 0.0
    %760 = vmatprep.subr.mxu0 0.0
    %761 = vmatpush1.msra.mxu0 0.0
    %762 = vmatprep.subr.mxu0 0.0
    %763 = vmatpush1.msra.mxu0 0.0
    %764 = vmatprep.subr.mxu0 0.0
    %765 = vmatpush1.msra.mxu0 0.0
    %766 = vmatprep.subr.mxu0 0.0
    %767 = vmatpush1.msra.mxu0 0.0
    %768 = vmatprep.subr.mxu0 0.0
    %769 = vmatpush1.msra.mxu0 0.0
    %770 = vmatprep.subr.mxu0 0.0
    %771 = vmatpush1.msra.mxu0 0.0
    %772 = vmatprep.subr.mxu0 0.0
    %773 = vmatpush1.msra.mxu0 0.0
    %774 = vmatprep.subr.mxu0 0.0
    %775 = vmatpush1.msra.mxu0 0.0
    %776 = vmatprep.subr.mxu0 0.0
    %777 = vmatpush1.msra.mxu0 0.0
    %778 = vmatprep.subr.mxu0 0.0
    %779 = vmatpush1.msra.mxu0 0.0
    %780 = vmatprep.subr.mxu0 0.0
    %781 = vmatpush1.msra.mxu0 0.0
    %782 = vmatprep.mubr.f32.mxu0 0.0
    %783 = vmatmul.mubr.f32.gmra.mrb[0].mxu0 %v487
    %v784 = vpop.f32.mrb[0].mxu0
    %v785 = vadd.f32 0.0, %v784
    %v786 = vpop.f32.mrb[0].mxu0
    %v787 = vadd.f32 0.0, %v786
    %788 = vdwg.mxu0
    %v789 = vadd.f32 %v379, %v572
    %v790 = vadd.f32 %v380, %v574
    %v791 = vadd.f32 %v381, %v643
    %v792 = vadd.f32 %v382, %v645
    %v793 = vadd.f32 %v383, %v714
    %v794 = vadd.f32 %v384, %v716
    %v795 = vadd.f32 %v385, %v785
    %v796 = vadd.f32 %v386, %v787
    %s797 = scalar_lea.vmem [#allocation5], 16
    %v798 = vld [vmem:[%s797] sm:$0xff]
    %799 = vrot.lane.b32.xlu0 %v387, 88
    %v800 = vpop.permute.xlu0 %799
    %801 = vrot.lane.b32.xlu0 %v388, 88
    %v802 = vpop.permute.xlu0 %801
    %803 = vrot.lane.b32.xlu0 %v389, 88
    %v804 = vpop.permute.xlu0 %803
    %805 = vrot.lane.b32.xlu0 %v390, 88
    %v806 = vpop.permute.xlu0 %805
    %807 = vrot.lane.b32.xlu0 %v391, 88
    %v808 = vpop.permute.xlu0 %807
    %809 = vrot.lane.b32.xlu0 %v392, 88
    %v810 = vpop.permute.xlu0 %809
    %811 = vrot.lane.b32.xlu0 %v393, 88
    %v812 = vpop.permute.xlu0 %811
    %813 = vrot.lane.b32.xlu0 %v394, 88
    %v814 = vpop.permute.xlu0 %813
    %815 = vrot.lane.b32.xlu0 %v395, 88
    %v816 = vpop.permute.xlu0 %815
    %817 = vrot.lane.b32.xlu0 %v396, 88
    %v818 = vpop.permute.xlu0 %817
    %819 = vrot.lane.b32.xlu0 %v397, 88
    %v820 = vpop.permute.xlu0 %819
    %821 = vrot.lane.b32.xlu0 %v398, 88
    %v822 = vpop.permute.xlu0 %821
    %823 = vrot.lane.b32.xlu0 %v399, 88
    %v824 = vpop.permute.xlu0 %823
    %825 = vrot.lane.b32.xlu0 %v400, 88
    %v826 = vpop.permute.xlu0 %825
    %827 = vrot.lane.b32.xlu0 %v401, 88
    %v828 = vpop.permute.xlu0 %827
    %829 = vrot.lane.b32.xlu0 %v402, 88
    %v830 = vpop.permute.xlu0 %829
    %831 = vrot.lane.b32.xlu0 %v403, 88
    %v832 = vpop.permute.xlu0 %831
    %833 = vrot.lane.b32.xlu0 %v404, 88
    %v834 = vpop.permute.xlu0 %833
    %vm835 = vcmask 719872
    %v836 = vsel %vm835, %v800, %v802
    %v837 = vsel %vm835, %v802, %v804
    %v838 = vsel %vm835, %v804, %v806
    %v839 = vsel %vm835, %v806, %v808
    %v840 = vsel %vm835, %v808, %v810
    %v841 = vsel %vm835, %v810, %v812
    %v842 = vsel %vm835, %v812, %v814
    %v843 = vsel %vm835, %v814, %v816
    %v844 = vsel %vm835, %v818, %v820
    %v845 = vsel %vm835, %v820, %v822
    %v846 = vsel %vm835, %v822, %v824
    %v847 = vsel %vm835, %v824, %v826
    %v848 = vsel %vm835, %v826, %v828
    %v849 = vsel %vm835, %v828, %v830
    %v850 = vsel %vm835, %v830, %v832
    %v851 = vsel %vm835, %v832, %v834
    %v861 = vsel %vm66, %v798, 0
    %v863 = vsel %vm70, %v844, 0
    %v865 = vsel %vm70, %v845, 0
    %v867 = vsel %vm70, %v846, 0
    %v869 = vsel %vm70, %v847, 0
    %v871 = vsel %vm70, %v848, 0
    %v873 = vsel %vm70, %v849, 0
    %v875 = vsel %vm70, %v850, 0
    %v877 = vsel %vm70, %v851, 0
    %879 = vmatprep.subr.mxu0 %v837
    %880 = vmatpush1.msra.mxu0 %v836
    %881 = vmatprep.subr.mxu0 %v865
    %882 = vmatpush1.msra.mxu0 %v863
    %883 = vmatprep.subr.mxu0 0.0
    %884 = vmatpush1.msra.mxu0 0.0
    %885 = vmatprep.subr.mxu0 0.0
    %886 = vmatpush1.msra.mxu0 0.0
    %887 = vmatprep.subr.mxu0 0.0
    %888 = vmatpush1.msra.mxu0 0.0
    %889 = vmatprep.subr.mxu0 0.0
    %890 = vmatpush1.msra.mxu0 0.0
    %891 = vmatprep.subr.mxu0 0.0
    %892 = vmatpush1.msra.mxu0 0.0
    %893 = vmatprep.subr.mxu0 0.0
    %894 = vmatpush1.msra.mxu0 0.0
    %895 = vmatprep.subr.mxu0 0.0
    %896 = vmatpush1.msra.mxu0 0.0
    %897 = vmatprep.subr.mxu0 0.0
    %898 = vmatpush1.msra.mxu0 0.0
    %899 = vmatprep.subr.mxu0 0.0
    %900 = vmatpush1.msra.mxu0 0.0
    %901 = vmatprep.subr.mxu0 0.0
    %902 = vmatpush1.msra.mxu0 0.0
    %903 = vmatprep.subr.mxu0 0.0
    %904 = vmatpush1.msra.mxu0 0.0
    %905 = vmatprep.subr.mxu0 0.0
    %906 = vmatpush1.msra.mxu0 0.0
    %907 = vmatprep.subr.mxu0 0.0
    %908 = vmatpush1.msra.mxu0 0.0
    %909 = vmatprep.subr.mxu0 0.0
    %910 = vmatpush1.msra.mxu0 0.0
    %911 = vmatprep.subr.mxu0 0.0
    %912 = vmatpush1.msra.mxu0 0.0
    %913 = vmatprep.subr.mxu0 0.0
    %914 = vmatpush1.msra.mxu0 0.0
    %915 = vmatprep.subr.mxu0 0.0
    %916 = vmatpush1.msra.mxu0 0.0
    %917 = vmatprep.subr.mxu0 0.0
    %918 = vmatpush1.msra.mxu0 0.0
    %919 = vmatprep.subr.mxu0 0.0
    %920 = vmatpush1.msra.mxu0 0.0
    %921 = vmatprep.subr.mxu0 0.0
    %922 = vmatpush1.msra.mxu0 0.0
    %923 = vmatprep.subr.mxu0 0.0
    %924 = vmatpush1.msra.mxu0 0.0
    %925 = vmatprep.subr.mxu0 0.0
    %926 = vmatpush1.msra.mxu0 0.0
    %927 = vmatprep.subr.mxu0 0.0
    %928 = vmatpush1.msra.mxu0 0.0
    %929 = vmatprep.subr.mxu0 0.0
    %930 = vmatpush1.msra.mxu0 0.0
    %931 = vmatprep.subr.mxu0 0.0
    %932 = vmatpush1.msra.mxu0 0.0
    %933 = vmatprep.subr.mxu0 0.0
    %934 = vmatpush1.msra.mxu0 0.0
    %935 = vmatprep.subr.mxu0 0.0
    %936 = vmatpush1.msra.mxu0 0.0
    %937 = vmatprep.subr.mxu0 0.0
    %938 = vmatpush1.msra.mxu0 0.0
    %939 = vmatprep.subr.mxu0 0.0
    %940 = vmatpush1.msra.mxu0 0.0
    %941 = vmatprep.subr.mxu0 0.0
    %942 = vmatpush1.msra.mxu0 0.0
    %943 = vmatprep.mubr.f32.mxu0 0.0
    %944 = vmatmul.mubr.f32.gmra.mrb[0].mxu0 %v861
    %v945 = vpop.f32.mrb[0].mxu0
    %v946 = vadd.f32 0.0, %v945
    %v947 = vpop.f32.mrb[0].mxu0
    %v948 = vadd.f32 0.0, %v947
    %949 = vdwg.mxu0
    %950 = vmatprep.subr.mxu0 %v839
    %951 = vmatpush1.msra.mxu0 %v838
    %952 = vmatprep.subr.mxu0 %v869
    %953 = vmatpush1.msra.mxu0 %v867
    %954 = vmatprep.subr.mxu0 0.0
    %955 = vmatpush1.msra.mxu0 0.0
    %956 = vmatprep.subr.mxu0 0.0
    %957 = vmatpush1.msra.mxu0 0.0
    %958 = vmatprep.subr.mxu0 0.0
    %959 = vmatpush1.msra.mxu0 0.0
    %960 = vmatprep.subr.mxu0 0.0
    %961 = vmatpush1.msra.mxu0 0.0
    %962 = vmatprep.subr.mxu0 0.0
    %963 = vmatpush1.msra.mxu0 0.0
    %964 = vmatprep.subr.mxu0 0.0
    %965 = vmatpush1.msra.mxu0 0.0
    %966 = vmatprep.subr.mxu0 0.0
    %967 = vmatpush1.msra.mxu0 0.0
    %968 = vmatprep.subr.mxu0 0.0
    %969 = vmatpush1.msra.mxu0 0.0
    %970 = vmatprep.subr.mxu0 0.0
    %971 = vmatpush1.msra.mxu0 0.0
    %972 = vmatprep.subr.mxu0 0.0
    %973 = vmatpush1.msra.mxu0 0.0
    %974 = vmatprep.subr.mxu0 0.0
    %975 = vmatpush1.msra.mxu0 0.0
    %976 = vmatprep.subr.mxu0 0.0
    %977 = vmatpush1.msra.mxu0 0.0
    %978 = vmatprep.subr.mxu0 0.0
    %979 = vmatpush1.msra.mxu0 0.0
    %980 = vmatprep.subr.mxu0 0.0
    %981 = vmatpush1.msra.mxu0 0.0
    %982 = vmatprep.subr.mxu0 0.0
    %983 = vmatpush1.msra.mxu0 0.0
    %984 = vmatprep.subr.mxu0 0.0
    %985 = vmatpush1.msra.mxu0 0.0
    %986 = vmatprep.subr.mxu0 0.0
    %987 = vmatpush1.msra.mxu0 0.0
    %988 = vmatprep.subr.mxu0 0.0
    %989 = vmatpush1.msra.mxu0 0.0
    %990 = vmatprep.subr.mxu0 0.0
    %991 = vmatpush1.msra.mxu0 0.0
    %992 = vmatprep.subr.mxu0 0.0
    %993 = vmatpush1.msra.mxu0 0.0
    %994 = vmatprep.subr.mxu0 0.0
    %995 = vmatpush1.msra.mxu0 0.0
    %996 = vmatprep.subr.mxu0 0.0
    %997 = vmatpush1.msra.mxu0 0.0
    %998 = vmatprep.subr.mxu0 0.0
    %999 = vmatpush1.msra.mxu0 0.0
    %1000 = vmatprep.subr.mxu0 0.0
    %1001 = vmatpush1.msra.mxu0 0.0
    %1002 = vmatprep.subr.mxu0 0.0
    %1003 = vmatpush1.msra.mxu0 0.0
    %1004 = vmatprep.subr.mxu0 0.0
    %1005 = vmatpush1.msra.mxu0 0.0
    %1006 = vmatprep.subr.mxu0 0.0
    %1007 = vmatpush1.msra.mxu0 0.0
    %1008 = vmatprep.subr.mxu0 0.0
    %1009 = vmatpush1.msra.mxu0 0.0
    %1010 = vmatprep.subr.mxu0 0.0
    %1011 = vmatpush1.msra.mxu0 0.0
    %1012 = vmatprep.subr.mxu0 0.0
    %1013 = vmatpush1.msra.mxu0 0.0
    %1014 = vmatprep.mubr.f32.mxu0 0.0
    %1015 = vmatmul.mubr.f32.gmra.mrb[0].mxu0 %v861
    %v1016 = vpop.f32.mrb[0].mxu0
    %v1017 = vadd.f32 0.0, %v1016
    %v1018 = vpop.f32.mrb[0].mxu0
    %v1019 = vadd.f32 0.0, %v1018
    %1020 = vdwg.mxu0
    %1021 = vmatprep.subr.mxu0 %v841
    %1022 = vmatpush1.msra.mxu0 %v840
    %1023 = vmatprep.subr.mxu0 %v873
    %1024 = vmatpush1.msra.mxu0 %v871
    %1025 = vmatprep.subr.mxu0 0.0
    %1026 = vmatpush1.msra.mxu0 0.0
    %1027 = vmatprep.subr.mxu0 0.0
    %1028 = vmatpush1.msra.mxu0 0.0
    %1029 = vmatprep.subr.mxu0 0.0
    %1030 = vmatpush1.msra.mxu0 0.0
    %1031 = vmatprep.subr.mxu0 0.0
    %1032 = vmatpush1.msra.mxu0 0.0
    %1033 = vmatprep.subr.mxu0 0.0
    %1034 = vmatpush1.msra.mxu0 0.0
    %1035 = vmatprep.subr.mxu0 0.0
    %1036 = vmatpush1.msra.mxu0 0.0
    %1037 = vmatprep.subr.mxu0 0.0
    %1038 = vmatpush1.msra.mxu0 0.0
    %1039 = vmatprep.subr.mxu0 0.0
    %1040 = vmatpush1.msra.mxu0 0.0
    %1041 = vmatprep.subr.mxu0 0.0
    %1042 = vmatpush1.msra.mxu0 0.0
    %1043 = vmatprep.subr.mxu0 0.0
    %1044 = vmatpush1.msra.mxu0 0.0
    %1045 = vmatprep.subr.mxu0 0.0
    %1046 = vmatpush1.msra.mxu0 0.0
    %1047 = vmatprep.subr.mxu0 0.0
    %1048 = vmatpush1.msra.mxu0 0.0
    %1049 = vmatprep.subr.mxu0 0.0
    %1050 = vmatpush1.msra.mxu0 0.0
    %1051 = vmatprep.subr.mxu0 0.0
    %1052 = vmatpush1.msra.mxu0 0.0
    %1053 = vmatprep.subr.mxu0 0.0
    %1054 = vmatpush1.msra.mxu0 0.0
    %1055 = vmatprep.subr.mxu0 0.0
    %1056 = vmatpush1.msra.mxu0 0.0
    %1057 = vmatprep.subr.mxu0 0.0
    %1058 = vmatpush1.msra.mxu0 0.0
    %1059 = vmatprep.subr.mxu0 0.0
    %1060 = vmatpush1.msra.mxu0 0.0
    %1061 = vmatprep.subr.mxu0 0.0
    %1062 = vmatpush1.msra.mxu0 0.0
    %1063 = vmatprep.subr.mxu0 0.0
    %1064 = vmatpush1.msra.mxu0 0.0
    %1065 = vmatprep.subr.mxu0 0.0
    %1066 = vmatpush1.msra.mxu0 0.0
    %1067 = vmatprep.subr.mxu0 0.0
    %1068 = vmatpush1.msra.mxu0 0.0
    %1069 = vmatprep.subr.mxu0 0.0
    %1070 = vmatpush1.msra.mxu0 0.0
    %1071 = vmatprep.subr.mxu0 0.0
    %1072 = vmatpush1.msra.mxu0 0.0
    %1073 = vmatprep.subr.mxu0 0.0
    %1074 = vmatpush1.msra.mxu0 0.0
    %1075 = vmatprep.subr.mxu0 0.0
    %1076 = vmatpush1.msra.mxu0 0.0
    %1077 = vmatprep.subr.mxu0 0.0
    %1078 = vmatpush1.msra.mxu0 0.0
    %1079 = vmatprep.subr.mxu0 0.0
    %1080 = vmatpush1.msra.mxu0 0.0
    %1081 = vmatprep.subr.mxu0 0.0
    %1082 = vmatpush1.msra.mxu0 0.0
    %1083 = vmatprep.subr.mxu0 0.0
    %1084 = vmatpush1.msra.mxu0 0.0
    %1085 = vmatprep.mubr.f32.mxu0 0.0
    %1086 = vmatmul.mubr.f32.gmra.mrb[0].mxu0 %v861
    %v1087 = vpop.f32.mrb[0].mxu0
    %v1088 = vadd.f32 0.0, %v1087
    %v1089 = vpop.f32.mrb[0].mxu0
    %v1090 = vadd.f32 0.0, %v1089
    %1091 = vdwg.mxu0
    %1092 = vmatprep.subr.mxu0 %v843
    %1093 = vmatpush1.msra.mxu0 %v842
    %1094 = vmatprep.subr.mxu0 %v877
    %1095 = vmatpush1.msra.mxu0 %v875
    %1096 = vmatprep.subr.mxu0 0.0
    %1097 = vmatpush1.msra.mxu0 0.0
    %1098 = vmatprep.subr.mxu0 0.0
    %1099 = vmatpush1.msra.mxu0 0.0
    %1100 = vmatprep.subr.mxu0 0.0
    %1101 = vmatpush1.msra.mxu0 0.0
    %1102 = vmatprep.subr.mxu0 0.0
    %1103 = vmatpush1.msra.mxu0 0.0
    %1104 = vmatprep.subr.mxu0 0.0
    %1105 = vmatpush1.msra.mxu0 0.0
    %1106 = vmatprep.subr.mxu0 0.0
    %1107 = vmatpush1.msra.mxu0 0.0
    %1108 = vmatprep.subr.mxu0 0.0
    %1109 = vmatpush1.msra.mxu0 0.0
    %1110 = vmatprep.subr.mxu0 0.0
    %1111 = vmatpush1.msra.mxu0 0.0
    %1112 = vmatprep.subr.mxu0 0.0
    %1113 = vmatpush1.msra.mxu0 0.0
    %1114 = vmatprep.subr.mxu0 0.0
    %1115 = vmatpush1.msra.mxu0 0.0
    %1116 = vmatprep.subr.mxu0 0.0
    %1117 = vmatpush1.msra.mxu0 0.0
    %1118 = vmatprep.subr.mxu0 0.0
    %1119 = vmatpush1.msra.mxu0 0.0
    %1120 = vmatprep.subr.mxu0 0.0
    %1121 = vmatpush1.msra.mxu0 0.0
    %1122 = vmatprep.subr.mxu0 0.0
    %1123 = vmatpush1.msra.mxu0 0.0
    %1124 = vmatprep.subr.mxu0 0.0
    %1125 = vmatpush1.msra.mxu0 0.0
    %1126 = vmatprep.subr.mxu0 0.0
    %1127 = vmatpush1.msra.mxu0 0.0
    %1128 = vmatprep.subr.mxu0 0.0
    %1129 = vmatpush1.msra.mxu0 0.0
    %1130 = vmatprep.subr.mxu0 0.0
    %1131 = vmatpush1.msra.mxu0 0.0
    %1132 = vmatprep.subr.mxu0 0.0
    %1133 = vmatpush1.msra.mxu0 0.0
    %1134 = vmatprep.subr.mxu0 0.0
    %1135 = vmatpush1.msra.mxu0 0.0
    %1136 = vmatprep.subr.mxu0 0.0
    %1137 = vmatpush1.msra.mxu0 0.0
    %1138 = vmatprep.subr.mxu0 0.0
    %1139 = vmatpush1.msra.mxu0 0.0
    %1140 = vmatprep.subr.mxu0 0.0
    %1141 = vmatpush1.msra.mxu0 0.0
    %1142 = vmatprep.subr.mxu0 0.0
    %1143 = vmatpush1.msra.mxu0 0.0
    %1144 = vmatprep.subr.mxu0 0.0
    %1145 = vmatpush1.msra.mxu0 0.0
    %1146 = vmatprep.subr.mxu0 0.0
    %1147 = vmatpush1.msra.mxu0 0.0
    %1148 = vmatprep.subr.mxu0 0.0
    %1149 = vmatpush1.msra.mxu0 0.0
    %1150 = vmatprep.subr.mxu0 0.0
    %1151 = vmatpush1.msra.mxu0 0.0
    %1152 = vmatprep.subr.mxu0 0.0
    %1153 = vmatpush1.msra.mxu0 0.0
    %1154 = vmatprep.subr.mxu0 0.0
    %1155 = vmatpush1.msra.mxu0 0.0
    %1156 = vmatprep.mubr.f32.mxu0 0.0
    %1157 = vmatmul.mubr.f32.gmra.mrb[0].mxu0 %v861
    %v1158 = vpop.f32.mrb[0].mxu0
    %v1159 = vadd.f32 0.0, %v1158
    %v1160 = vpop.f32.mrb[0].mxu0
    %v1161 = vadd.f32 0.0, %v1160
    %1162 = vdwg.mxu0
    %v1163 = vadd.f32 %v789, %v946
    %v1164 = vadd.f32 %v790, %v948
    %v1165 = vadd.f32 %v791, %v1017
    %v1166 = vadd.f32 %v792, %v1019
    %v1167 = vadd.f32 %v793, %v1088
    %v1168 = vadd.f32 %v794, %v1090
    %v1169 = vadd.f32 %v795, %v1159
    %v1170 = vadd.f32 %v796, %v1161
    %1171 = vst [vmem:[#allocation7] sm:$0xff] %v1163
    %1172 = vst [vmem:[#allocation7 + $0x8] sm:$0xff] %v1164
    %1173 = vst [vmem:[#allocation7 + $0x10] sm:$0xff] %v1165
    %1174 = vst [vmem:[#allocation7 + $0x18] sm:$0xff] %v1166
    %1175 = vst [vmem:[#allocation7 + $0x20] sm:$0xff] %v1167
    %1176 = vst [vmem:[#allocation7 + $0x28] sm:$0xff] %v1168
    %1177 = vst [vmem:[#allocation7 + $0x30] sm:$0xff] %v1169
    %1178 = vst [vmem:[#allocation7 + $0x38] sm:$0xff] %v1170
    // Predicated region
    $region22: #{tpu_custom_call.1} parent=1 // pred_check
      _
    $region23: #{tpu_custom_call.1} parent=1 // pred_check_branch
      %1180 = sbr.rel (0) target = $region25
    $region24: #{tpu_custom_call.1} parent=1 // pred_region
      %s1182 = ssub.s32 1024, 1024
      %1183 = vsyncadd [#allocation4], %s1182
      %s1185 = sshll.u32 [#allocation7], 4
      %s1186 = int_to_ptr.vmem [resolvable:$true] %s1185
      %1188 = dma.vmem_to_hbm [thread:$0]  %s1186, 1024, %s3, [#allocation4]
    $region25: #{tpu_custom_call.1} parent=1 // pred_fallthru
      _
    // Predicated region
    $region26: #{tpu_custom_call.1} parent=1 // pred_check
      _
    $region27: #{tpu_custom_call.1} parent=1 // pred_check_branch
      %1190 = sbr.rel (0) target = $region29
    $region28: #{tpu_custom_call.1} parent=1 // pred_region
      %1191 = dma.done [#allocation4], 1024
    $region29: #{tpu_custom_call.1} parent=1 // pred_fallthru
      _
    %1192 = vsyncpa [#allocation3], 1
    %1193 = vsyncpa [#allocation6], 1
    %1194 = vsyncpa [#allocation4], 1

</llo_original>
